<compile_context>
chip_gen: v6e
topology: v6e:2x2x1
jax: 0.10.0
libtpu: 0.0.40
codegen_flags: <defaults>
</compile_context>

<pallas_src>
import math

import jax
import jax.numpy as jnp
from jax.experimental import pallas as pl
from jax.experimental.pallas import tpu as pltpu

LN_EPS = 1e-5


def _merge_ln_reduce_kernel(x_ref, we_ref, wo_ref, bias_ref, o_ref):
    """One row-block of fused PatchMerging2D.

    x_ref  : (th, 2, Wh, 2C)  input rows; axis 1 is the row parity, last dim
                              packs (col parity, C)
    we_ref : (2C, C2)  bf16 weight rows for the even-row channels (gamma folded)
    wo_ref : (2C, C2)  bf16 weight rows for the odd-row channels  (gamma folded)
    bias_ref:(1, C2)   f32  == beta @ W (LN beta folded through the Linear)
    o_ref  : (th*Wh, C2)
    """
    th, _, wh, two_c = x_ref.shape
    m = th * wh
    inv_n = 1.0 / (2.0 * two_c)  # 1 / 4C

    xe = x_ref[:, 0].astype(jnp.float32).reshape(m, two_c)  # even input rows
    xo = x_ref[:, 1].astype(jnp.float32).reshape(m, two_c)  # odd  input rows

    # Single-pass LayerNorm statistics over the virtual 4C-wide row, combined
    # from the two 2C-wide halves (one lane reduction each, f32 throughout).
    row_sum = jnp.sum(xe + xo, axis=-1, keepdims=True)
    row_sqs = jnp.sum(xe * xe + xo * xo, axis=-1, keepdims=True)
    mean = row_sum * inv_n
    var = row_sqs * inv_n - mean * mean
    rstd = jax.lax.rsqrt(var + LN_EPS)

    # Normalize (gamma/beta already folded into the weights/bias), cast to
    # bf16 for the MXU, accumulate in f32.
    xne = ((xe - mean) * rstd).astype(jnp.bfloat16)
    xno = ((xo - mean) * rstd).astype(jnp.bfloat16)

    acc = jnp.dot(xne, we_ref[...], preferred_element_type=jnp.float32)
    acc = acc + jnp.dot(xno, wo_ref[...], preferred_element_type=jnp.float32)
    o_ref[...] = (acc + bias_ref[...]).astype(o_ref.dtype)


def _choose_row_tile(BHh, Wh, per_row_bytes, *, max_rows=1024,
                     row_budget_bytes=16 << 20):
    """Pick how many (B*H/2)-rows each grid step processes."""
    # Large tiles amortise the ~0.35us/step pipeline overhead; cap by a VMEM
    # budget and by a target of ~1024 flattened rows per step.
    th = min(BHh,
             max(1, max_rows // max(Wh, 1)),
             max(1, row_budget_bytes // max(per_row_bytes, 1)))
    # Keep >= 2 grid steps so the single "parallel" axis can use both v7x TCs.
    if BHh >= 2:
        th = min(th, (BHh + 1) // 2)
    # Keep the output block's sublane dim (th*Wh) a multiple of 8; otherwise
    # fall back to a single full block (block == array is always legal).
    step = 8 // math.gcd(Wh, 8)
    th = (th // step) * step
    if th <= 0:
        th = BHh
    return th


def patch_merging_2d(x, w_reduction, gamma, beta, *, max_rows=1024,
                     row_budget_bytes=16 << 20):
    """Forward pass of PatchMerging2D.

    x           : (B, H, W, C)   NHWC
    w_reduction : (4C, 2C)       == torch Linear(4C, 2C).weight.T
    gamma, beta : (4C,)          LayerNorm affine params
    returns     : (B, H//2, W//2, 2C)
    """
    B, H, W, C = x.shape
    assert H % 2 == 0 and W % 2 == 0, "even spatial dims expected"
    # TODO(synk): odd-H/W SHAPE_FIX cropping path of the torch module not implemented.
    Hh, Wh = H // 2, W // 2
    BHh = B * Hh
    C4, C2 = w_reduction.shape
    assert C4 == 4 * C

    # --- Fold the LayerNorm affine through the bias-free Linear --------------
    #   (x_hat * gamma + beta) @ W == x_hat @ (gamma[:, None] * W) + beta @ W
    w32 = w_reduction.astype(jnp.float32) * gamma.astype(jnp.float32)[:, None]
    # Regroup the 4C rows into the two row-parity halves the kernel sees:
    #   even rows carry 4C-channels [0:C] (even col) and [2C:3C] (odd col)
    #   odd  rows carry 4C-channels [C:2C] (even col) and [3C:4C] (odd col)
    w_even = jnp.concatenate([w32[0 * C:1 * C], w32[2 * C:3 * C]], axis=0
                             ).astype(jnp.bfloat16)                 # (2C, C2)
    w_odd = jnp.concatenate([w32[1 * C:2 * C], w32[3 * C:4 * C]], axis=0
                            ).astype(jnp.bfloat16)                  # (2C, C2)
    bias = jnp.matmul(beta.astype(jnp.float32),
                      w_reduction.astype(jnp.float32),
                      precision=jax.lax.Precision.HIGHEST).reshape(1, C2)

    # --- Zero-copy view exposing the 2x2 patch structure ----------------------
    # (B, H, W, C) -> (B*H/2, 2, W/2, 2C): axis 1 is the row parity, the last
    # axis packs (col parity, C).  The gather becomes a single contiguous block
    # DMA per grid step: x is read from HBM exactly once, nothing extra is
    # materialized in HBM.
    xr = x.reshape(BHh, 2, Wh, 2 * C)

    # --- Tile selection + explicit VMEM budget --------------------------------
    itemsize = x.dtype.itemsize
    per_row = (
        2 * (2 * Wh * 2 * C) * itemsize   # input block (both parities), double-buffered
        + 2 * Wh * C2 * itemsize          # output block, double-buffered
        + 2 * Wh * 2 * C * (4 + 2)        # f32 + bf16 working copies of the two halves
        + Wh * C2 * 4                     # f32 accumulator
    )
    th = _choose_row_tile(BHh, Wh, per_row, max_rows=max_rows,
                          row_budget_bytes=row_budget_bytes)
    grid = pl.cdiv(BHh, th)               # no divisibility requirement
    fixed = 2 * (2 * C) * C2 * 2 + C2 * 4           # resident bf16 weights + f32 bias
    vmem_limit = int(min(48 << 20, max(32 << 20, th * per_row + fixed + (8 << 20))))

    # NOTE: with small C the 2C lane width is < 128 (masked stores); real
    # VMamba configs (C >= 96) are lane-dense.
    out2d = pl.pallas_call(
        _merge_ln_reduce_kernel,
        out_shape=jax.ShapeDtypeStruct((BHh * Wh, C2), x.dtype),
        grid_spec=pltpu.PrefetchScalarGridSpec(
            num_scalar_prefetch=0,
            grid=(grid,),
            in_specs=[
                pl.BlockSpec((th, 2, Wh, 2 * C), lambda i: (i, 0, 0, 0)),  # input rows
                pl.BlockSpec((2 * C, C2), lambda i: (0, 0)),    # resident weight (even)
                pl.BlockSpec((2 * C, C2), lambda i: (0, 0)),    # resident weight (odd)
                pl.BlockSpec((1, C2), lambda i: (0, 0)),        # folded bias
            ],
            out_specs=pl.BlockSpec((th * Wh, C2), lambda i: (i, 0)),
        ),
        compiler_params=pltpu.CompilerParams(
            dimension_semantics=("parallel",),
            vmem_limit_bytes=vmem_limit,
        ),
    )(xr, w_even, w_odd, bias)

    return out2d.reshape(B, Hh, Wh, C2)


def _reference(x, w_reduction, gamma, beta):
    """Pure-JAX f32 reference mirroring the torch module."""
    x0 = x[:, 0::2, 0::2, :]
    x1 = x[:, 1::2, 0::2, :]
    x2 = x[:, 0::2, 1::2, :]
    x3 = x[:, 1::2, 1::2, :]
    xc = jnp.concatenate([x0, x1, x2, x3], axis=-1).astype(jnp.float32)
    mean = jnp.mean(xc, axis=-1, keepdims=True)
    var = jnp.mean((xc - mean) ** 2, axis=-1, keepdims=True)
    xn = (xc - mean) * jax.lax.rsqrt(var + LN_EPS)
    xn = xn * gamma + beta
    return jnp.einsum("bhwc,cd->bhwd", xn, w_reduction,
                      precision=jax.lax.Precision.HIGHEST)


if __name__ == "__main__":
    # Small, even shapes consistent with the module: B=2, H=W=16, C=64
    # -> 4C = 256, 2C = 128 (both input and output lane widths are lane-dense).
    B, H, W, C = 2, 16, 16, 64
    key = jax.random.PRNGKey(0)
    kx, kw, kg, kb = jax.random.split(key, 4)

    x = jax.random.normal(kx, (B, H, W, C), dtype=jnp.float32)
    w_reduction = (jax.random.normal(kw, (4 * C, 2 * C), dtype=jnp.float32)
                   * (1.0 / jnp.sqrt(4.0 * C)))
    gamma = 1.0 + 0.01 * jax.random.normal(kg, (4 * C,), dtype=jnp.float32)
    beta = 0.01 * jax.random.normal(kb, (4 * C,), dtype=jnp.float32)

    out = jax.block_until_ready(patch_merging_2d(x, w_reduction, gamma, beta))
    ref = jax.block_until_ready(_reference(x, w_reduction, gamma, beta))

    assert out.shape == (B, H // 2, W // 2, 2 * C), out.shape
    err = float(jnp.max(jnp.abs(out - ref)))
    # The kernel feeds the MXU bf16 operands (f32 accumulation), so allow the
    # corresponding quantization error vs. the pure-f32 reference.
    assert err < 3e-2, err
    print("KERNEL_OK")
</pallas_src>

<mosaic_0001>
module attributes {stable_mosaic.version = 11 : i64} {
  func.func @_merge_ln_reduce_kernel(%arg0: i32, %arg1: memref<8x2x8x128xf32, #tpu.memory_space<vmem>>, %arg2: memref<128x128xbf16, #tpu.memory_space<vmem>>, %arg3: memref<128x128xbf16, #tpu.memory_space<vmem>>, %arg4: memref<1x128xf32, #tpu.memory_space<vmem>>, %arg5: memref<64x128xf32, #tpu.memory_space<vmem>>) attributes {dimension_semantics = [#tpu.dimension_semantics<parallel>], iteration_bounds = array<i64: 2>, scalar_prefetch = 0 : i64, scratch_operands = 0 : i64, tpu.core_type = #tpu.core_type<tc>, window_params = [{transform_indices = @transform_0, window_bounds = array<i64: 8, 2, 8, 128>}, {pipeline_mode = #tpu.pipeline_mode<synchronous>, transform_indices = @transform_1, window_bounds = array<i64: 128, 128>}, {pipeline_mode = #tpu.pipeline_mode<synchronous>, transform_indices = @transform_2, window_bounds = array<i64: 128, 128>}, {pipeline_mode = #tpu.pipeline_mode<synchronous>, transform_indices = @transform_3, window_bounds = array<i64: 1, 128>}, {transform_indices = @transform_4, window_bounds = array<i64: 64, 128>}]} {
    %c0 = arith.constant 0 : index
    %c0_0 = arith.constant 0 : index
    %c0_1 = arith.constant 0 : index
    %c0_2 = arith.constant 0 : index
    %0 = vector.load %arg1[%c0, %c0_0, %c0_1, %c0_2] : memref<8x2x8x128xf32, #tpu.memory_space<vmem>>, vector<8x1x8x128xf32>
    %1 = vector.shape_cast %0 : vector<8x1x8x128xf32> to vector<8x8x128xf32>
    %2 = vector.shape_cast %1 : vector<8x8x128xf32> to vector<64x128xf32>
    %c0_3 = arith.constant 0 : index
    %c1 = arith.constant 1 : index
    %c0_4 = arith.constant 0 : index
    %c0_5 = arith.constant 0 : index
    %3 = vector.load %arg1[%c0_3, %c1, %c0_4, %c0_5] : memref<8x2x8x128xf32, #tpu.memory_space<vmem>>, vector<8x1x8x128xf32>
    %4 = vector.shape_cast %3 : vector<8x1x8x128xf32> to vector<8x8x128xf32>
    %5 = vector.shape_cast %4 : vector<8x8x128xf32> to vector<64x128xf32>
    %6 = arith.addf %2, %5 : vector<64x128xf32>
    %cst = arith.constant dense<0.000000e+00> : vector<64xf32>
    %7 = vector.multi_reduction <add>, %6, %cst [1] : vector<64x128xf32> to vector<64xf32>
    %8 = vector.shape_cast %7 : vector<64xf32> to vector<64x1xf32>
    %9 = arith.mulf %2, %2 : vector<64x128xf32>
    %10 = arith.mulf %5, %5 : vector<64x128xf32>
    %11 = arith.addf %9, %10 : vector<64x128xf32>
    %cst_6 = arith.constant dense<0.000000e+00> : vector<64xf32>
    %12 = vector.multi_reduction <add>, %11, %cst_6 [1] : vector<64x128xf32> to vector<64xf32>
    %13 = vector.shape_cast %12 : vector<64xf32> to vector<64x1xf32>
    %cst_7 = arith.constant 3.906250e-03 : f32
    %14 = vector.broadcast %cst_7 : f32 to vector<64x1xf32>
    %15 = arith.mulf %8, %14 : vector<64x1xf32>
    %cst_8 = arith.constant 3.906250e-03 : f32
    %16 = vector.broadcast %cst_8 : f32 to vector<64x1xf32>
    %17 = arith.mulf %13, %16 : vector<64x1xf32>
    %18 = arith.mulf %15, %15 : vector<64x1xf32>
    %19 = arith.subf %17, %18 : vector<64x1xf32>
    %cst_9 = arith.constant 9.99999974E-6 : f32
    %20 = vector.broadcast %cst_9 : f32 to vector<64x1xf32>
    %21 = arith.addf %19, %20 : vector<64x1xf32>
    %22 = math.rsqrt %21 : vector<64x1xf32>
    %23 = vector.broadcast %15 : vector<64x1xf32> to vector<64x128xf32>
    %24 = arith.subf %2, %23 : vector<64x128xf32>
    %25 = vector.broadcast %22 : vector<64x1xf32> to vector<64x128xf32>
    %26 = arith.mulf %24, %25 : vector<64x128xf32>
    %27 = arith.truncf %26 : vector<64x128xf32> to vector<64x128xbf16>
    %28 = vector.broadcast %15 : vector<64x1xf32> to vector<64x128xf32>
    %29 = arith.subf %5, %28 : vector<64x128xf32>
    %30 = vector.broadcast %22 : vector<64x1xf32> to vector<64x128xf32>
    %31 = arith.mulf %29, %30 : vector<64x128xf32>
    %32 = arith.truncf %31 : vector<64x128xf32> to vector<64x128xbf16>
    %c0_10 = arith.constant 0 : index
    %c0_11 = arith.constant 0 : index
    %33 = vector.load %arg2[%c0_10, %c0_11] : memref<128x128xbf16, #tpu.memory_space<vmem>>, vector<128x128xbf16>
    %cst_12 = arith.constant dense<0.000000e+00> : vector<64x128xf32>
    %34 = tpu.matmul %27, %33, %cst_12 {dimension_numbers = #tpu.dot_dimension_numbers<[1], [0], [0], [1], [0, 0, 1, 1], [], []>} : vector<64x128xbf16>, vector<128x128xbf16>, vector<64x128xf32> -> vector<64x128xf32>
    %c0_13 = arith.constant 0 : index
    %c0_14 = arith.constant 0 : index
    %35 = vector.load %arg3[%c0_13, %c0_14] : memref<128x128xbf16, #tpu.memory_space<vmem>>, vector<128x128xbf16>
    %cst_15 = arith.constant dense<0.000000e+00> : vector<64x128xf32>
    %36 = tpu.matmul %32, %35, %cst_15 {dimension_numbers = #tpu.dot_dimension_numbers<[1], [0], [0], [1], [0, 0, 1, 1], [], []>} : vector<64x128xbf16>, vector<128x128xbf16>, vector<64x128xf32> -> vector<64x128xf32>
    %37 = arith.addf %34, %36 : vector<64x128xf32>
    %c0_16 = arith.constant 0 : index
    %c0_17 = arith.constant 0 : index
    %38 = vector.load %arg4[%c0_16, %c0_17] : memref<1x128xf32, #tpu.memory_space<vmem>>, vector<1x128xf32>
    %39 = vector.broadcast %38 : vector<1x128xf32> to vector<64x128xf32>
    %40 = arith.addf %37, %39 : vector<64x128xf32>
    %c0_18 = arith.constant 0 : index
    %c0_19 = arith.constant 0 : index
    %41 = vector.load %arg5[%c0_18, %c0_19] : memref<64x128xf32, #tpu.memory_space<vmem>>, vector<64x128xf32>
    tpu.vector_store %arg5[%c0_18, %c0_19], %40 {strides = array<i32>} : memref<64x128xf32, #tpu.memory_space<vmem>>, vector<64x128xf32>,
    return
  }
  func.func @transform_0(%arg0: i32) -> (i32, i32, i32, i32) {
    %c0_i32 = arith.constant 0 : i32
    %c0_i32_0 = arith.constant 0 : i32
    %c0_i32_1 = arith.constant 0 : i32
    %c0_i32_2 = arith.constant 0 : i32
    return %arg0, %c0_i32, %c0_i32_0, %c0_i32_1 : i32, i32, i32, i32
  }
  func.func @transform_1(%arg0: i32) -> (i32, i32) {
    %c0_i32 = arith.constant 0 : i32
    %c0_i32_0 = arith.constant 0 : i32
    %c0_i32_1 = arith.constant 0 : i32
    return %c0_i32, %c0_i32_0 : i32, i32
  }
  func.func @transform_2(%arg0: i32) -> (i32, i32) {
    %c0_i32 = arith.constant 0 : i32
    %c0_i32_0 = arith.constant 0 : i32
    %c0_i32_1 = arith.constant 0 : i32
    return %c0_i32, %c0_i32_0 : i32, i32
  }
  func.func @transform_3(%arg0: i32) -> (i32, i32) {
    %c0_i32 = arith.constant 0 : i32
    %c0_i32_0 = arith.constant 0 : i32
    %c0_i32_1 = arith.constant 0 : i32
    return %c0_i32, %c0_i32_0 : i32, i32
  }
  func.func @transform_4(%arg0: i32) -> (i32, i32) {
    %c0_i32 = arith.constant 0 : i32
    %c0_i32_0 = arith.constant 0 : i32
    return %arg0, %c0_i32 : i32, i32
  }
}

</mosaic_0001>

<llo_original>
// kernel: tpu_custom_call.1
$region0: #{tpu_custom_call.1}
  #allocation0 [shape = 'u32[]', space=smem, size = 0x4, offset = 0x4, fixed_abs, tag = 'smem constant byte address 0x4 - core index']
  #allocation1 [shape = 'u32[144,128]{1,0:T(1,128)}', space=vmem, size = 0x12000, scoped, tag = 'internal scratch']
  %s0 = inlined_call_operand.hbm [shape: f32[16,2,8,128], index: 0, kind: input, shape index: {}]
  %s1 = inlined_call_operand.hbm [shape: bf16[128,128], index: 1, kind: input, shape index: {}]
  %s2 = inlined_call_operand.hbm [shape: bf16[128,128], index: 2, kind: input, shape index: {}]
  %s3 = inlined_call_operand.vmem [shape: f32[1,128], index: 3, kind: input, shape index: {}]
  %s4 = inlined_call_operand.hbm [shape: f32[128,128], index: 4, kind: output, shape index: {}]
  %s5 = sld [smem:[#allocation0]]
  $region61: #{tpu_custom_call.1} parent=0
    _
  %s7 = ssub.s32 1, %s5
  %s8 = scalar_select 0, %s7, %s5
  $region1: #{tpu_custom_call.1} parent=0
    #allocation2 [shape = 'u8[131072]{0}', space=vmem, size = 0x20000, scoped, tag = 'input window, operand 0']
    #allocation3 [shape = 's32[2]{0}', space=sflag, size = 0x8, scoped, tag = 'scoped memory for tpu_custom_call.1']
    #allocation4 [shape = 's32[2]{0}', space=sflag, size = 0x8, scoped, tag = 'scoped memory for tpu_custom_call.1']
    #allocation5 [shape = 'u8[32768]{0}', space=vmem, size = 0x8000, scoped, tag = 'input window, operand 1, single buffered']
    #allocation6 [shape = 's32[1]{0}', space=sflag, size = 0x4, scoped, tag = 'scoped memory for tpu_custom_call.1']
    #allocation7 [shape = 'u8[32768]{0}', space=vmem, size = 0x8000, scoped, tag = 'input window, operand 2, single buffered']
    #allocation8 [shape = 'u8[65536]{0}', space=vmem, size = 0x10000, scoped, tag = 'output window, operand 0']
    %9 = vsyncpa [#allocation3], 0
    %s10 = scalar_lea.sflag [#allocation3], 1
    %11 = vsyncpa %s10, 0
    %12 = vsyncpa [#allocation6], 0
    %13 = vsyncpa [#allocation4], 0
    %s14 = scalar_lea.sflag [#allocation4], 1
    %15 = vsyncpa %s14, 0
    loop: start=0, step=1, limit=4
    $region2: #{tpu_custom_call.1} parent=1 // loop_pre_header
      _
    $region3: #{tpu_custom_call.1} parent=1 // loop_header
      %s17 = sphi 0, %s21
      %p18 = scmp.ge.s32.totalorder %s17, 4
      %s27 = sphi 0, %s29
      %s30 = sphi 0, %s27
      %s31 = sphi 0, %s30
      %s47 = sphi 0, %s31
      %s51 = sphi 0, %s51
      %s53 = sphi 0, %s51
      %s54 = sphi 0, %s53
      %s68 = sphi 0, %s54
      %s72 = sphi 0, %s72
      %s74 = sphi 0, %s72
      %s75 = sphi 0, %s74
      %s89 = sphi 0, %s75
      %s93 = sphi 0, %s93
      %s95 = sphi 0, %s93
      %s96 = sphi 0, %s95
      %s110 = sphi 0, %s96
      %s116 = sphi 0, %s118
      %s119 = sphi 0, %s116
      %s120 = sphi 0, %s119
      %s136 = sphi 0, %s120
    $region4: #{tpu_custom_call.1} parent=1 // loop_header_branch
      %20 = sbr.rel (%p18) target = $region8
    $region5: #{tpu_custom_call.1} parent=1 // loop_body
      %s22 = ssub.s32 %s17, 1
      %s23 = ssub.s32 %s17, 2
      %s24 = sadd.s32 %s17, 1
      %s25 = ssub.s32 %s17, %s24
      %p26 = scmp.eq.s32.totalorder %s25, 0
      %s28 = sadd.s32 %s27, 1
      %s29 = scalar_select %p26, %s27, %s28
      %p32 = pneg %p26
      %p33 = scmp.eq.s32.totalorder %s17, 1
      %p34 = por %p32, %p33
      %p35 = scmp.ne.s32.totalorder %s27, %s30
      %p36 = scmp.eq.s32.totalorder %s17, 0
      %p37 = por %p35, %p36
      %p38 = scmp.ne.s32.totalorder %s27, %s30
      %p39 = scmp.eq.s32.totalorder %s22, 1
      %p40 = por %p38, %p39
      %p41 = scmp.ne.s32.totalorder %s30, %s31
      %p42 = scmp.eq.s32.totalorder %s22, 0
      %p43 = por %p41, %p42
      %p44 = scmp.ne.s32.totalorder %s30, %s31
      %p45 = scmp.eq.s32.totalorder %s23, 1
      %p46 = por %p44, %p45
      %p48 = scmp.ne.s32.totalorder %s31, %s47
      %p49 = scmp.eq.s32.totalorder %s23, 0
      %p50 = por %p48, %p49
      %s52 = sadd.s32 %s51, 1
      %p55 = scmp.eq.s32.totalorder %s17, 1
      %p56 = scmp.ne.s32.totalorder %s51, %s53
      %p57 = scmp.eq.s32.totalorder %s17, 0
      %p58 = por %p56, %p57
      %p59 = scmp.ne.s32.totalorder %s51, %s53
      %p60 = scmp.eq.s32.totalorder %s22, 1
      %p61 = por %p59, %p60
      %p62 = scmp.ne.s32.totalorder %s53, %s54
      %p63 = scmp.eq.s32.totalorder %s22, 0
      %p64 = por %p62, %p63
      %p65 = scmp.ne.s32.totalorder %s53, %s54
      %p66 = scmp.eq.s32.totalorder %s23, 1
      %p67 = por %p65, %p66
      %p69 = scmp.ne.s32.totalorder %s54, %s68
      %p70 = scmp.eq.s32.totalorder %s23, 0
      %p71 = por %p69, %p70
      %s73 = sadd.s32 %s72, 1
      %p76 = scmp.eq.s32.totalorder %s17, 1
      %p77 = scmp.ne.s32.totalorder %s72, %s74
      %p78 = scmp.eq.s32.totalorder %s17, 0
      %p79 = por %p77, %p78
      %p80 = scmp.ne.s32.totalorder %s72, %s74
      %p81 = scmp.eq.s32.totalorder %s22, 1
      %p82 = por %p80, %p81
      %p83 = scmp.ne.s32.totalorder %s74, %s75
      %p84 = scmp.eq.s32.totalorder %s22, 0
      %p85 = por %p83, %p84
      %p86 = scmp.ne.s32.totalorder %s74, %s75
      %p87 = scmp.eq.s32.totalorder %s23, 1
      %p88 = por %p86, %p87
      %p90 = scmp.ne.s32.totalorder %s75, %s89
      %p91 = scmp.eq.s32.totalorder %s23, 0
      %p92 = por %p90, %p91
      %s94 = sadd.s32 %s93, 1
      %p97 = scmp.eq.s32.totalorder %s17, 1
      %p98 = scmp.ne.s32.totalorder %s93, %s95
      %p99 = scmp.eq.s32.totalorder %s17, 0
      %p100 = por %p98, %p99
      %p101 = scmp.ne.s32.totalorder %s93, %s95
      %p102 = scmp.eq.s32.totalorder %s22, 1
      %p103 = por %p101, %p102
      %p104 = scmp.ne.s32.totalorder %s95, %s96
      %p105 = scmp.eq.s32.totalorder %s22, 0
      %p106 = por %p104, %p105
      %p107 = scmp.ne.s32.totalorder %s95, %s96
      %p108 = scmp.eq.s32.totalorder %s23, 1
      %p109 = por %p107, %p108
      %p111 = scmp.ne.s32.totalorder %s96, %s110
      %p112 = scmp.eq.s32.totalorder %s23, 0
      %p113 = por %p111, %p112
      %s114 = ssub.s32 %s17, %s24
      %p115 = scmp.eq.s32.totalorder %s114, 0
      %s117 = sadd.s32 %s116, 1
      %s118 = scalar_select %p115, %s116, %s117
      %p121 = pneg %p115
      %p122 = scmp.eq.s32.totalorder %s17, 1
      %p123 = por %p121, %p122
      %p124 = scmp.ne.s32.totalorder %s116, %s119
      %p125 = scmp.eq.s32.totalorder %s17, 0
      %p126 = por %p124, %p125
      %p127 = scmp.ne.s32.totalorder %s116, %s119
      %p128 = scmp.eq.s32.totalorder %s22, 1
      %p129 = por %p127, %p128
      %p130 = scmp.ne.s32.totalorder %s119, %s120
      %p131 = scmp.eq.s32.totalorder %s22, 0
      %p132 = por %p130, %p131
      %p133 = scmp.ne.s32.totalorder %s119, %s120
      %p134 = scmp.eq.s32.totalorder %s23, 1
      %p135 = por %p133, %p134
      %p137 = scmp.ne.s32.totalorder %s120, %s136
      %p138 = scmp.eq.s32.totalorder %s23, 0
      %p139 = por %p137, %p138
      %p140 = scmp.le.s32.totalorder 1, %s17
      %p141 = scmp.lt.s32.totalorder %s17, 3
      %p142 = pnand %p140, %p141
      %p143 = pneg %p142
      // Predicated region
      $region9: #{tpu_custom_call.1} parent=5 // pred_check
        _
      $region10: #{tpu_custom_call.1} parent=5 // pred_check_branch
        %145 = sbr.rel (%p142) target = $region12
      $region11: #{tpu_custom_call.1} parent=5 // pred_region
        %s146 = ssub.s32 %s17, 1
        // Predicated region
        $region13: #{tpu_custom_call.1} parent=11 // pred_check
          %p147 = pneg %p64
        $region14: #{tpu_custom_call.1} parent=11 // pred_check_branch
          %149 = sbr.rel (%p147) target = $region16
        $region15: #{tpu_custom_call.1} parent=11 // pred_region
          %s151 = ssub.s32 1024, 1024
          %152 = vsyncadd [#allocation6], %s151
          %s153 = sshll.u32 [#allocation5], 4
          %s154 = int_to_ptr.vmem [resolvable:$true] %s153
          %159 = dma.hbm_to_vmem [thread:$0]  %s1, 1024, %s154, [#allocation6], 64, 64, 4
        $region16: #{tpu_custom_call.1} parent=11 // pred_fallthru
          _
        // Predicated region
        $region17: #{tpu_custom_call.1} parent=11 // pred_check
          %p160 = pneg %p85
        $region18: #{tpu_custom_call.1} parent=11 // pred_check_branch
          %162 = sbr.rel (%p160) target = $region20
        $region19: #{tpu_custom_call.1} parent=11 // pred_region
          %s164 = ssub.s32 1024, 1024
          %165 = vsyncadd [#allocation6], %s164
          %s166 = sshll.u32 [#allocation7], 4
          %s167 = int_to_ptr.vmem [resolvable:$true] %s166
          %172 = dma.hbm_to_vmem [thread:$0]  %s2, 1024, %s167, [#allocation6], 64, 64, 4
        $region20: #{tpu_custom_call.1} parent=11 // pred_fallthru
          _
        // Predicated region
        $region21: #{tpu_custom_call.1} parent=11 // pred_check
          %p173 = pneg %p106
        $region22: #{tpu_custom_call.1} parent=11 // pred_check_branch
          %175 = sbr.rel (%p173) target = $region24
        $region23: #{tpu_custom_call.1} parent=11 // pred_region
          _
        $region24: #{tpu_custom_call.1} parent=11 // pred_fallthru
          _
      $region12: #{tpu_custom_call.1} parent=5 // pred_fallthru
        _
      %p176 = scmp.lt.s32.totalorder %s17, 2
      // Predicated region
      $region25: #{tpu_custom_call.1} parent=5 // pred_check
        %p177 = pneg %p176
      $region26: #{tpu_custom_call.1} parent=5 // pred_check_branch
        %179 = sbr.rel (%p177) target = $region28
      $region27: #{tpu_custom_call.1} parent=5 // pred_region
        // Predicated region
        $region29: #{tpu_custom_call.1} parent=27 // pred_check
          %p180 = pneg %p37
        $region30: #{tpu_custom_call.1} parent=27 // pred_check_branch
          %182 = sbr.rel (%p180) target = $region32
        $region31: #{tpu_custom_call.1} parent=27 // pred_region
          %s183 = sand.u32 %s27, 1
          %s184 = scalar_lea.sflag [#allocation3], %s183
          %s185 = sand.u32 %s27, 1
          %s186 = smul.addr %s185, 128
          %s187 = scalar_lea.vmem [#allocation2], %s186
          %s188 = smul.u32 8, %s17
          %s190 = ssub.s32 2048, 2048
          %191 = vsyncadd %s184, %s190
          %s192 = smul.addr %s188, 2
          %s193 = smul.addr %s192, 128
          %s194 = scalar_lea.hbm %s0, %s193
          %s195 = sshll.u32 %s187, 4
          %s196 = int_to_ptr.vmem [resolvable:$true] %s195
          %201 = dma.hbm_to_vmem [thread:$0]  %s194, 2048, %s196, %s184, 128, 128, 8
        $region32: #{tpu_custom_call.1} parent=27 // pred_fallthru
          _
      $region28: #{tpu_custom_call.1} parent=5 // pred_fallthru
        _
      %p202 = scmp.le.s32.totalorder 1, %s17
      %p203 = scmp.lt.s32.totalorder %s17, 3
      %p204 = pnand %p202, %p203
      %p205 = pneg %p204
      // Predicated region
      $region33: #{tpu_custom_call.1} parent=5 // pred_check
        _
      $region34: #{tpu_custom_call.1} parent=5 // pred_check_branch
        %207 = sbr.rel (%p204) target = $region36
      $region35: #{tpu_custom_call.1} parent=5 // pred_region
        %s208 = ssub.s32 %s17, 1
        %s209 = sand.u32 %s30, 1
        %s210 = scalar_lea.sflag [#allocation3], %s209
        %s211 = sand.u32 %s30, 1
        %s212 = smul.addr %s211, 128
        %s213 = scalar_lea.vmem [#allocation2], %s212
        // Predicated region
        $region37: #{tpu_custom_call.1} parent=35 // pred_check
          %p214 = pneg %p43
        $region38: #{tpu_custom_call.1} parent=35 // pred_check_branch
          %216 = sbr.rel (%p214) target = $region40
        $region39: #{tpu_custom_call.1} parent=35 // pred_region
          %217 = dma.done %s210, 2048
        $region40: #{tpu_custom_call.1} parent=35 // pred_fallthru
          _
        // Predicated region
        $region41: #{tpu_custom_call.1} parent=35 // pred_check
          %p218 = pneg %p64
        $region42: #{tpu_custom_call.1} parent=35 // pred_check_branch
          %220 = sbr.rel (%p218) target = $region44
        $region43: #{tpu_custom_call.1} parent=35 // pred_region
          %221 = dma.done [#allocation6], 1024
        $region44: #{tpu_custom_call.1} parent=35 // pred_fallthru
          _
        // Predicated region
        $region45: #{tpu_custom_call.1} parent=35 // pred_check
          %p222 = pneg %p85
        $region46: #{tpu_custom_call.1} parent=35 // pred_check_branch
          %224 = sbr.rel (%p222) target = $region48
        $region47: #{tpu_custom_call.1} parent=35 // pred_region
          %225 = dma.done [#allocation6], 1024
        $region48: #{tpu_custom_call.1} parent=35 // pred_fallthru
          _
        %s226 = sand.u32 %s30, 1
        %s227 = scalar_lea.sflag [#allocation3], %s226
        %s228 = sand.u32 %s30, 1
        %s229 = smul.addr %s228, 128
        %s230 = scalar_lea.vmem [#allocation2], %s229
        %p231 = pneg %p43
        %p232 = pneg %p40
        %p233 = pneg %p64
        %p234 = pneg %p61
        %p235 = pneg %p85
        %p236 = pneg %p82
        %p237 = pneg %p106
        %p238 = pneg %p103
        %p239 = pneg %p132
        %p240 = pneg %p129
        %s241 = sand.u32 %s119, 1
        %s242 = scalar_lea.sflag [#allocation4], %s241
        %s243 = sand.u32 %s119, 1
        %s244 = smul.addr %s243, 64
        %s245 = scalar_lea.vmem [#allocation8], %s244
        %s246 = smul.u32 8, %s22
        %s247 = smul.u32 8, %s22
        %v249 = vld [vmem:[%s213] sm:$0xff]
        %v250 = vld [vmem:[%s213 + $0x10] sm:$0xff]
        %v251 = vld [vmem:[%s213 + $0x20] sm:$0xff]
        %v252 = vld [vmem:[%s213 + $0x30] sm:$0xff]
        %v253 = vld [vmem:[%s213 + $0x40] sm:$0xff]
        %v254 = vld [vmem:[%s213 + $0x50] sm:$0xff]
        %v255 = vld [vmem:[%s213 + $0x60] sm:$0xff]
        %v256 = vld [vmem:[%s213 + $0x70] sm:$0xff]
        %s257 = scalar_lea.vmem %s213, 8 [#allocation2]
        %v258 = vld [vmem:[%s257] sm:$0xff]
        %v259 = vld [vmem:[%s257 + $0x10] sm:$0xff]
        %v260 = vld [vmem:[%s257 + $0x20] sm:$0xff]
        %v261 = vld [vmem:[%s257 + $0x30] sm:$0xff]
        %v262 = vld [vmem:[%s257 + $0x40] sm:$0xff]
        %v263 = vld [vmem:[%s257 + $0x50] sm:$0xff]
        %v264 = vld [vmem:[%s257 + $0x60] sm:$0xff]
        %v265 = vld [vmem:[%s257 + $0x70] sm:$0xff]
        %v266 = vadd.f32 %v249, %v258
        %v267 = vadd.f32 %v250, %v259
        %v268 = vadd.f32 %v251, %v260
        %v269 = vadd.f32 %v252, %v261
        %v270 = vadd.f32 %v253, %v262
        %v271 = vadd.f32 %v254, %v263
        %v272 = vadd.f32 %v255, %v264
        %v273 = vadd.f32 %v256, %v265
        %274 = vadd.xlane.f32.xlu0 %v266
        %v275 = vpop.xlane.xlu0 %274
        %276 = vadd.xlane.f32.xlu0 %v267
        %v277 = vpop.xlane.xlu0 %276
        %278 = vadd.xlane.f32.xlu0 %v268
        %v279 = vpop.xlane.xlu0 %278
        %280 = vadd.xlane.f32.xlu0 %v269
        %v281 = vpop.xlane.xlu0 %280
        %282 = vadd.xlane.f32.xlu0 %v270
        %v283 = vpop.xlane.xlu0 %282
        %284 = vadd.xlane.f32.xlu0 %v271
        %v285 = vpop.xlane.xlu0 %284
        %286 = vadd.xlane.f32.xlu0 %v272
        %v287 = vpop.xlane.xlu0 %286
        %288 = vadd.xlane.f32.xlu0 %v273
        %v289 = vpop.xlane.xlu0 %288
        %v290 = vmul.f32 %v249, %v249
        %v291 = vmul.f32 %v250, %v250
        %v292 = vmul.f32 %v251, %v251
        %v293 = vmul.f32 %v252, %v252
        %v294 = vmul.f32 %v253, %v253
        %v295 = vmul.f32 %v254, %v254
        %v296 = vmul.f32 %v255, %v255
        %v297 = vmul.f32 %v256, %v256
        %v298 = vmul.f32 %v258, %v258
        %v299 = vmul.f32 %v259, %v259
        %v300 = vmul.f32 %v260, %v260
        %v301 = vmul.f32 %v261, %v261
        %v302 = vmul.f32 %v262, %v262
        %v303 = vmul.f32 %v263, %v263
        %v304 = vmul.f32 %v264, %v264
        %v305 = vmul.f32 %v265, %v265
        %v306 = vadd.f32 %v290, %v298
        %v307 = vadd.f32 %v291, %v299
        %v308 = vadd.f32 %v292, %v300
        %v309 = vadd.f32 %v293, %v301
        %v310 = vadd.f32 %v294, %v302
        %v311 = vadd.f32 %v295, %v303
        %v312 = vadd.f32 %v296, %v304
        %v313 = vadd.f32 %v297, %v305
        %314 = vadd.xlane.f32.xlu0 %v306
        %v315 = vpop.xlane.xlu0 %314
        %316 = vadd.xlane.f32.xlu0 %v307
        %v317 = vpop.xlane.xlu0 %316
        %318 = vadd.xlane.f32.xlu0 %v308
        %v319 = vpop.xlane.xlu0 %318
        %320 = vadd.xlane.f32.xlu0 %v309
        %v321 = vpop.xlane.xlu0 %320
        %322 = vadd.xlane.f32.xlu0 %v310
        %v323 = vpop.xlane.xlu0 %322
        %324 = vadd.xlane.f32.xlu0 %v311
        %v325 = vpop.xlane.xlu0 %324
        %326 = vadd.xlane.f32.xlu0 %v312
        %v327 = vpop.xlane.xlu0 %326
        %328 = vadd.xlane.f32.xlu0 %v313
        %v329 = vpop.xlane.xlu0 %328
        %v330 = vmul.f32 %v275, 0.00390625
        %v331 = vmul.f32 %v277, 0.00390625
        %v332 = vmul.f32 %v279, 0.00390625
        %v333 = vmul.f32 %v281, 0.00390625
        %v334 = vmul.f32 %v283, 0.00390625
        %v335 = vmul.f32 %v285, 0.00390625
        %v336 = vmul.f32 %v287, 0.00390625
        %v337 = vmul.f32 %v289, 0.00390625
        %v338 = vmul.f32 %v315, 0.00390625
        %v339 = vmul.f32 %v317, 0.00390625
        %v340 = vmul.f32 %v319, 0.00390625
        %v341 = vmul.f32 %v321, 0.00390625
        %v342 = vmul.f32 %v323, 0.00390625
        %v343 = vmul.f32 %v325, 0.00390625
        %v344 = vmul.f32 %v327, 0.00390625
        %v345 = vmul.f32 %v329, 0.00390625
        %v346 = vmul.f32 %v330, %v330
        %v347 = vmul.f32 %v331, %v331
        %v348 = vmul.f32 %v332, %v332
        %v349 = vmul.f32 %v333, %v333
        %v350 = vmul.f32 %v334, %v334
        %v351 = vmul.f32 %v335, %v335
        %v352 = vmul.f32 %v336, %v336
        %v353 = vmul.f32 %v337, %v337
        %v354 = vsub.f32 %v338, %v346
        %v355 = vsub.f32 %v339, %v347
        %v356 = vsub.f32 %v340, %v348
        %v357 = vsub.f32 %v341, %v349
        %v358 = vsub.f32 %v342, %v350
        %v359 = vsub.f32 %v343, %v351
        %v360 = vsub.f32 %v344, %v352
        %v361 = vsub.f32 %v345, %v353
        %v362 = vadd.f32 %v354, 1e-05
        %v363 = vadd.f32 %v355, 1e-05
        %v364 = vadd.f32 %v356, 1e-05
        %v365 = vadd.f32 %v357, 1e-05
        %v366 = vadd.f32 %v358, 1e-05
        %v367 = vadd.f32 %v359, 1e-05
        %v368 = vadd.f32 %v360, 1e-05
        %v369 = vadd.f32 %v361, 1e-05
        %v370 = vrsqrt.pop %v362
        %v371 = vrsqrt.pop %v363
        %v372 = vrsqrt.pop %v364
        %v373 = vrsqrt.pop %v365
        %v374 = vrsqrt.pop %v366
        %v375 = vrsqrt.pop %v367
        %v376 = vrsqrt.pop %v368
        %v377 = vrsqrt.pop %v369
        %v378 = vsub.f32 %v249, %v330
        %v379 = vsub.f32 %v250, %v331
        %v380 = vsub.f32 %v251, %v332
        %v381 = vsub.f32 %v252, %v333
        %v382 = vsub.f32 %v253, %v334
        %v383 = vsub.f32 %v254, %v335
        %v384 = vsub.f32 %v255, %v336
        %v385 = vsub.f32 %v256, %v337
        %v386 = vmul.f32 %v378, %v370
        %v387 = vmul.f32 %v379, %v371
        %v388 = vmul.f32 %v380, %v372
        %v389 = vmul.f32 %v381, %v373
        %v390 = vmul.f32 %v382, %v374
        %v391 = vmul.f32 %v383, %v375
        %v392 = vmul.f32 %v384, %v376
        %v393 = vmul.f32 %v385, %v377
        %v394 = vpack.c.bf16 %v387, %v386
        %v395 = vpack.c.bf16 %v389, %v388
        %v396 = vpack.c.bf16 %v391, %v390
        %v397 = vpack.c.bf16 %v393, %v392
        %v398 = vsub.f32 %v258, %v330
        %v399 = vsub.f32 %v259, %v331
        %v400 = vsub.f32 %v260, %v332
        %v401 = vsub.f32 %v261, %v333
        %v402 = vsub.f32 %v262, %v334
        %v403 = vsub.f32 %v263, %v335
        %v404 = vsub.f32 %v264, %v336
        %v405 = vsub.f32 %v265, %v337
        %v406 = vmul.f32 %v398, %v370
        %v407 = vmul.f32 %v399, %v371
        %v408 = vmul.f32 %v400, %v372
        %v409 = vmul.f32 %v401, %v373
        %v410 = vmul.f32 %v402, %v374
        %v411 = vmul.f32 %v403, %v375
        %v412 = vmul.f32 %v404, %v376
        %v413 = vmul.f32 %v405, %v377
        %v414 = vpack.c.bf16 %v407, %v406
        %v415 = vpack.c.bf16 %v409, %v408
        %v416 = vpack.c.bf16 %v411, %v410
        %v417 = vpack.c.bf16 %v413, %v412
        %v418 = vld [vmem:[#allocation5] sm:$0xf]
        %v419 = vld [vmem:[#allocation5 + $0x4] sm:$0xf]
        %v420 = vld [vmem:[#allocation5 + $0x8] sm:$0xf]
        %v421 = vld [vmem:[#allocation5 + $0xc] sm:$0xf]
        %v422 = vld [vmem:[#allocation5 + $0x10] sm:$0xf]
        %v423 = vld [vmem:[#allocation5 + $0x14] sm:$0xf]
        %v424 = vld [vmem:[#allocation5 + $0x18] sm:$0xf]
        %v425 = vld [vmem:[#allocation5 + $0x1c] sm:$0xf]
        %v426 = vld [vmem:[#allocation5 + $0x20] sm:$0xf]
        %v427 = vld [vmem:[#allocation5 + $0x24] sm:$0xf]
        %v428 = vld [vmem:[#allocation5 + $0x28] sm:$0xf]
        %v429 = vld [vmem:[#allocation5 + $0x2c] sm:$0xf]
        %v430 = vld [vmem:[#allocation5 + $0x30] sm:$0xf]
        %v431 = vld [vmem:[#allocation5 + $0x34] sm:$0xf]
        %v432 = vld [vmem:[#allocation5 + $0x38] sm:$0xf]
        %v433 = vld [vmem:[#allocation5 + $0x3c] sm:$0xf]
        %v434 = vld [vmem:[#allocation7] sm:$0xf]
        %v435 = vld [vmem:[#allocation7 + $0x4] sm:$0xf]
        %v436 = vld [vmem:[#allocation7 + $0x8] sm:$0xf]
        %v437 = vld [vmem:[#allocation7 + $0xc] sm:$0xf]
        %v438 = vld [vmem:[#allocation7 + $0x10] sm:$0xf]
        %v439 = vld [vmem:[#allocation7 + $0x14] sm:$0xf]
        %v440 = vld [vmem:[#allocation7 + $0x18] sm:$0xf]
        %v441 = vld [vmem:[#allocation7 + $0x1c] sm:$0xf]
        %v442 = vld [vmem:[#allocation7 + $0x20] sm:$0xf]
        %v443 = vld [vmem:[#allocation7 + $0x24] sm:$0xf]
        %v444 = vld [vmem:[#allocation7 + $0x28] sm:$0xf]
        %v445 = vld [vmem:[#allocation7 + $0x2c] sm:$0xf]
        %v446 = vld [vmem:[#allocation7 + $0x30] sm:$0xf]
        %v447 = vld [vmem:[#allocation7 + $0x34] sm:$0xf]
        %v448 = vld [vmem:[#allocation7 + $0x38] sm:$0xf]
        %v449 = vld [vmem:[#allocation7 + $0x3c] sm:$0xf]
        %v466 = vunpack.c.l.b16 %v434
        %v467 = vunpack.c.l.b16 %v435
        %v468 = vunpack.c.l.b16 %v436
        %v469 = vunpack.c.l.b16 %v437
        %v470 = vunpack.c.l.b16 %v438
        %v471 = vunpack.c.l.b16 %v439
        %v472 = vunpack.c.l.b16 %v440
        %v473 = vunpack.c.l.b16 %v441
        %v474 = vunpack.c.l.b16 %v442
        %v475 = vunpack.c.l.b16 %v443
        %v476 = vunpack.c.l.b16 %v444
        %v477 = vunpack.c.l.b16 %v445
        %v478 = vunpack.c.l.b16 %v446
        %v479 = vunpack.c.l.b16 %v447
        %v480 = vunpack.c.l.b16 %v448
        %v481 = vunpack.c.l.b16 %v449
        %v482 = vpack.c.b16 %v467, %v466
        %v483 = vpack.c.b16 %v469, %v468
        %v484 = vpack.c.b16 %v471, %v470
        %v485 = vpack.c.b16 %v473, %v472
        %v486 = vpack.c.b16 %v475, %v474
        %v487 = vpack.c.b16 %v477, %v476
        %v488 = vpack.c.b16 %v479, %v478
        %v489 = vpack.c.b16 %v481, %v480
        %498 = vmatprep.subr.bf16.mxu0 0
        %499 = vmatpush1.bf16.msra.mxu0 %v489
        %500 = vmatprep.subr.bf16.mxu0 0
        %501 = vmatpush1.bf16.msra.mxu0 %v488
        %502 = vmatprep.subr.bf16.mxu0 0
        %503 = vmatpush1.bf16.msra.mxu0 %v487
        %504 = vmatprep.subr.bf16.mxu0 0
        %505 = vmatpush1.bf16.msra.mxu0 %v486
        %506 = vmatprep.subr.bf16.mxu0 0
        %507 = vmatpush1.bf16.msra.mxu0 %v485
        %508 = vmatprep.subr.bf16.mxu0 0
        %509 = vmatpush1.bf16.msra.mxu0 %v484
        %510 = vmatprep.subr.bf16.mxu0 0
        %511 = vmatpush1.bf16.msra.mxu0 %v483
        %512 = vmatprep.subr.bf16.mxu0 0
        %513 = vmatpush1.bf16.msra.mxu0 %v482
        %514 = vmatprep.subr.bf16.mxu0 0
        %515 = vmatpush2.bf16.msra.mxu0 0
        %516 = vmatprep.subr.bf16.mxu0 0
        %517 = vmatpush2.bf16.msra.mxu0 0
        %518 = vmatprep.subr.bf16.mxu0 0
        %519 = vmatpush2.bf16.msra.mxu0 0
        %520 = vmatprep.subr.bf16.mxu0 0
        %521 = vmatpush2.bf16.msra.mxu0 0
        %522 = vmatprep.subr.bf16.mxu0 0
        %523 = vmatpush2.bf16.msra.mxu0 0
        %524 = vmatprep.subr.bf16.mxu0 0
        %525 = vmatpush2.bf16.msra.mxu0 0
        %526 = vmatprep.subr.bf16.mxu0 0
        %527 = vmatpush2.bf16.msra.mxu0 0
        %528 = vmatprep.subr.bf16.mxu0 0
        %529 = vmatpush2.bf16.msra.mxu0 0
        %530 = vmatprep.mubr.bf16.mxu0 0
        %531 = vmatmul.mubr.bf16.gmra.mxu0 %v414
        %v532 = vpop.f32.mrf.mxu0
        %v533 = vadd.f32 0.0, %v532
        %v534 = vpop.f32.mrf.mxu0
        %v535 = vpop.f32.mrf.mxu0
        %v536 = vadd.f32 0.0, %v535
        %v537 = vpop.f32.mrf.mxu0
        %538 = vmatprep.mubr.bf16.mxu0 0
        %539 = vmatmul.mubr.bf16.gmra.mxu0 %v415
        %v540 = vpop.f32.mrf.mxu0
        %v541 = vadd.f32 0.0, %v540
        %v542 = vpop.f32.mrf.mxu0
        %v543 = vpop.f32.mrf.mxu0
        %v544 = vadd.f32 0.0, %v543
        %v545 = vpop.f32.mrf.mxu0
        %546 = vmatprep.mubr.bf16.mxu0 0
        %547 = vmatmul.mubr.bf16.gmra.mxu0 %v416
        %v548 = vpop.f32.mrf.mxu0
        %v549 = vadd.f32 0.0, %v548
        %v550 = vpop.f32.mrf.mxu0
        %v551 = vpop.f32.mrf.mxu0
        %v552 = vadd.f32 0.0, %v551
        %v553 = vpop.f32.mrf.mxu0
        %554 = vmatprep.mubr.bf16.mxu0 0
        %555 = vmatmul.mubr.bf16.gmra.mxu0 %v417
        %v556 = vpop.f32.mrf.mxu0
        %v557 = vadd.f32 0.0, %v556
        %v558 = vpop.f32.mrf.mxu0
        %v559 = vpop.f32.mrf.mxu0
        %v560 = vadd.f32 0.0, %v559
        %v561 = vpop.f32.mrf.mxu0
        %562 = vdwg.mxu0
        %v579 = vunpack.c.l.b16 %v418
        %v580 = vunpack.c.l.b16 %v419
        %v581 = vunpack.c.l.b16 %v420
        %v582 = vunpack.c.l.b16 %v421
        %v583 = vunpack.c.l.b16 %v422
        %v584 = vunpack.c.l.b16 %v423
        %v585 = vunpack.c.l.b16 %v424
        %v586 = vunpack.c.l.b16 %v425
        %v587 = vunpack.c.l.b16 %v426
        %v588 = vunpack.c.l.b16 %v427
        %v589 = vunpack.c.l.b16 %v428
        %v590 = vunpack.c.l.b16 %v429
        %v591 = vunpack.c.l.b16 %v430
        %v592 = vunpack.c.l.b16 %v431
        %v593 = vunpack.c.l.b16 %v432
        %v594 = vunpack.c.l.b16 %v433
        %v595 = vpack.c.b16 %v580, %v579
        %v596 = vpack.c.b16 %v582, %v581
        %v597 = vpack.c.b16 %v584, %v583
        %v598 = vpack.c.b16 %v586, %v585
        %v599 = vpack.c.b16 %v588, %v587
        %v600 = vpack.c.b16 %v590, %v589
        %v601 = vpack.c.b16 %v592, %v591
        %v602 = vpack.c.b16 %v594, %v593
        %611 = vmatprep.subr.bf16.mxu0 0
        %612 = vmatpush1.bf16.msra.mxu0 %v602
        %613 = vmatprep.subr.bf16.mxu0 0
        %614 = vmatpush1.bf16.msra.mxu0 %v601
        %615 = vmatprep.subr.bf16.mxu0 0
        %616 = vmatpush1.bf16.msra.mxu0 %v600
        %617 = vmatprep.subr.bf16.mxu0 0
        %618 = vmatpush1.bf16.msra.mxu0 %v599
        %619 = vmatprep.subr.bf16.mxu0 0
        %620 = vmatpush1.bf16.msra.mxu0 %v598
        %621 = vmatprep.subr.bf16.mxu0 0
        %622 = vmatpush1.bf16.msra.mxu0 %v597
        %623 = vmatprep.subr.bf16.mxu0 0
        %624 = vmatpush1.bf16.msra.mxu0 %v596
        %625 = vmatprep.subr.bf16.mxu0 0
        %626 = vmatpush1.bf16.msra.mxu0 %v595
        %627 = vmatprep.subr.bf16.mxu0 0
        %628 = vmatpush2.bf16.msra.mxu0 0
        %629 = vmatprep.subr.bf16.mxu0 0
        %630 = vmatpush2.bf16.msra.mxu0 0
        %631 = vmatprep.subr.bf16.mxu0 0
        %632 = vmatpush2.bf16.msra.mxu0 0
        %633 = vmatprep.subr.bf16.mxu0 0
        %634 = vmatpush2.bf16.msra.mxu0 0
        %635 = vmatprep.subr.bf16.mxu0 0
        %636 = vmatpush2.bf16.msra.mxu0 0
        %637 = vmatprep.subr.bf16.mxu0 0
        %638 = vmatpush2.bf16.msra.mxu0 0
        %639 = vmatprep.subr.bf16.mxu0 0
        %640 = vmatpush2.bf16.msra.mxu0 0
        %641 = vmatprep.subr.bf16.mxu0 0
        %642 = vmatpush2.bf16.msra.mxu0 0
        %643 = vmatprep.mubr.bf16.mxu0 0
        %644 = vmatmul.mubr.bf16.gmra.mxu0 %v394
        %v645 = vpop.f32.mrf.mxu0
        %v646 = vadd.f32 %v533, %v645
        %v647 = vpop.f32.mrf.mxu0
        %v648 = vpop.f32.mrf.mxu0
        %v649 = vadd.f32 %v536, %v648
        %v650 = vpop.f32.mrf.mxu0
        %651 = vmatprep.mubr.bf16.mxu0 0
        %652 = vmatmul.mubr.bf16.gmra.mxu0 %v395
        %v653 = vpop.f32.mrf.mxu0
        %v654 = vadd.f32 %v541, %v653
        %v655 = vpop.f32.mrf.mxu0
        %v656 = vpop.f32.mrf.mxu0
        %v657 = vadd.f32 %v544, %v656
        %v658 = vpop.f32.mrf.mxu0
        %659 = vmatprep.mubr.bf16.mxu0 0
        %660 = vmatmul.mubr.bf16.gmra.mxu0 %v396
        %v661 = vpop.f32.mrf.mxu0
        %v662 = vadd.f32 %v549, %v661
        %v663 = vpop.f32.mrf.mxu0
        %v664 = vpop.f32.mrf.mxu0
        %v665 = vadd.f32 %v552, %v664
        %v666 = vpop.f32.mrf.mxu0
        %667 = vmatprep.mubr.bf16.mxu0 0
        %668 = vmatmul.mubr.bf16.gmra.mxu0 %v397
        %v669 = vpop.f32.mrf.mxu0
        %v670 = vadd.f32 %v557, %v669
        %v671 = vpop.f32.mrf.mxu0
        %v672 = vpop.f32.mrf.mxu0
        %v673 = vadd.f32 %v560, %v672
        %v674 = vpop.f32.mrf.mxu0
        %675 = vdwg.mxu0
        %v676 = vld [vmem:[%s3] sm:$0x1]
        %v678 = vlaneseq
        %v679 = vshrl.u32 %v678, 7
        %v680 = vsub.s32 0, %v679
        %v681 = vrot.slane %v676, %v680
        %v683 = vadd.f32 %v646, %v681
        %v684 = vadd.f32 %v649, %v681
        %v685 = vadd.f32 %v654, %v681
        %v686 = vadd.f32 %v657, %v681
        %v687 = vadd.f32 %v662, %v681
        %v688 = vadd.f32 %v665, %v681
        %v689 = vadd.f32 %v670, %v681
        %v690 = vadd.f32 %v673, %v681
        %691 = vst [vmem:[%s245] sm:$0xff] %v683
        %692 = vst [vmem:[%s245 + $0x8] sm:$0xff] %v684
        %693 = vst [vmem:[%s245 + $0x10] sm:$0xff] %v685
        %694 = vst [vmem:[%s245 + $0x18] sm:$0xff] %v686
        %695 = vst [vmem:[%s245 + $0x20] sm:$0xff] %v687
        %696 = vst [vmem:[%s245 + $0x28] sm:$0xff] %v688
        %697 = vst [vmem:[%s245 + $0x30] sm:$0xff] %v689
        %698 = vst [vmem:[%s245 + $0x38] sm:$0xff] %v690
        %s699 = sand.u32 %s119, 1
        %s700 = scalar_lea.sflag [#allocation4], %s699
        %s701 = sand.u32 %s119, 1
        %s702 = smul.addr %s701, 64
        %s703 = scalar_lea.vmem [#allocation8], %s702
        // Predicated region
        $region49: #{tpu_custom_call.1} parent=35 // pred_check
          %p704 = pneg %p129
        $region50: #{tpu_custom_call.1} parent=35 // pred_check_branch
          %706 = sbr.rel (%p704) target = $region52
        $region51: #{tpu_custom_call.1} parent=35 // pred_region
          %s707 = smul.u32 8, %s22
          %s709 = ssub.s32 1024, 1024
          %710 = vsyncadd %s700, %s709
          %s711 = smul.addr %s707, 128
          %s712 = scalar_lea.hbm %s4, %s711
          %s713 = sshll.u32 %s703, 4
          %s714 = int_to_ptr.vmem [resolvable:$true] %s713
          %719 = dma.vmem_to_hbm [thread:$0]  %s714, 1024, %s712, %s700, 128, 128, 8
        $region52: #{tpu_custom_call.1} parent=35 // pred_fallthru
          _
      $region36: #{tpu_custom_call.1} parent=5 // pred_fallthru
        _
      %p720 = scmp.le.s32.totalorder 2, %s17
      // Predicated region
      $region53: #{tpu_custom_call.1} parent=5 // pred_check
        %p721 = pneg %p720
      $region54: #{tpu_custom_call.1} parent=5 // pred_check_branch
        %723 = sbr.rel (%p721) target = $region56
      $region55: #{tpu_custom_call.1} parent=5 // pred_region
        %s724 = ssub.s32 %s17, 2
        // Predicated region
        $region57: #{tpu_custom_call.1} parent=55 // pred_check
          %p725 = pneg %p135
        $region58: #{tpu_custom_call.1} parent=55 // pred_check_branch
          %727 = sbr.rel (%p725) target = $region60
        $region59: #{tpu_custom_call.1} parent=55 // pred_region
          %s728 = sand.u32 %s120, 1
          %s729 = scalar_lea.sflag [#allocation4], %s728
          %s730 = sand.u32 %s120, 1
          %s731 = smul.addr %s730, 64
          %s732 = scalar_lea.vmem [#allocation8], %s731
          %733 = dma.done %s729, 1024
        $region60: #{tpu_custom_call.1} parent=55 // pred_fallthru
          _
      $region56: #{tpu_custom_call.1} parent=5 // pred_fallthru
        _
    $region6: #{tpu_custom_call.1} parent=1 // loop_footer
      %s21 = sadd.s32 1, %s17
    $region7: #{tpu_custom_call.1} parent=1 // loop_footer_branch
      %16 = sbr.rel target = $region3
    $region8: #{tpu_custom_call.1} parent=1 // loop_exit
      _
    %734 = vsyncpa [#allocation3], 1
    %s735 = scalar_lea.sflag [#allocation3], 1
    %736 = vsyncpa %s735, 1
    %737 = vsyncpa [#allocation6], 1
    %738 = vsyncpa [#allocation4], 1
    %s739 = scalar_lea.sflag [#allocation4], 1
    %740 = vsyncpa %s739, 1

</llo_original>
